<compile_context>
chip_gen: v7x
topology: tpu7x:2x2x1
jax: 0.10.0
libtpu: 0.0.40
codegen_flags: <defaults>
</compile_context>

<pallas_src>
import math

import numpy as np
import jax
import jax.numpy as jnp
from jax.experimental import pallas as pl
from jax.experimental.pallas import tpu as pltpu


def get_rotary_matrix(context_window, embedding_dim):
    """Exact reproduction of the PyTorch helper (including the (i-1) quirk)."""
    R = np.zeros((context_window, embedding_dim, embedding_dim), dtype=np.float32)
    for position in range(context_window):
        for i in range(embedding_dim // 2):
            theta = 10000.0 ** (-2.0 * (i - 1) / embedding_dim)
            m_theta = position * theta
            R[position, 2 * i, 2 * i] = np.cos(m_theta)
            R[position, 2 * i, 2 * i + 1] = -np.sin(m_theta)
            R[position, 2 * i + 1, 2 * i] = np.sin(m_theta)
            R[position, 2 * i + 1, 2 * i + 1] = np.cos(m_theta)
    return jnp.asarray(R)


def get_rope_tables(context_window, embedding_dim):
    """cos/sin tables equivalent to get_rotary_matrix (same (i-1) quirk).

    For a row vector q:   (q @ R[p])[2i]   =  q[2i]*cos + q[2i+1]*sin
                          (q @ R[p])[2i+1] = -q[2i]*sin + q[2i+1]*cos
    so with swap(q)[2i] = q[2i+1], swap(q)[2i+1] = q[2i]:
        q @ R[p] = q * cos_tab[p] + swap(q) * sin_tab[p]
    where cos_tab repeats cos at (2i, 2i+1) and sin_tab carries (+sin, -sin).
    """
    half = embedding_dim // 2
    i = np.arange(half, dtype=np.float64)
    theta = 10000.0 ** (-2.0 * (i - 1.0) / embedding_dim)             # (half,)
    ang = np.arange(context_window, dtype=np.float64)[:, None] * theta[None, :]
    cos = np.repeat(np.cos(ang), 2, axis=1)                           # (cw, d)
    sin = np.zeros((context_window, embedding_dim), dtype=np.float64)
    sin[:, 0::2] = np.sin(ang)
    sin[:, 1::2] = -np.sin(ang)
    return jnp.asarray(cos, jnp.float32), jnp.asarray(sin, jnp.float32)


def rope_attn_kernel(x_ref, w_ref, cos_ref, sin_ref, o_ref):
    b_blk, m, d = x_ref.shape
    scale = 1.0 / math.sqrt(d)

    # One wide bf16 MXU matmul for q, k, v and the pair-swapped q, k used by
    # the RoPE rotation (f32 accumulation).
    x2 = x_ref[...].reshape(b_blk * m, d).astype(jnp.bfloat16)        # (rows, d)
    w = w_ref[...]                                                    # (d, 5d) bf16
    proj = jnp.dot(x2, w, preferred_element_type=jnp.float32)         # (rows, 5d)
    proj = proj.reshape(b_blk, m, 5 * d)
    q, k, v = proj[..., 0:d], proj[..., d:2 * d], proj[..., 2 * d:3 * d]
    q_sw, k_sw = proj[..., 3 * d:4 * d], proj[..., 4 * d:5 * d]

    # RoPE as pure elementwise VPU work on resident (m, d) tables, broadcast
    # across the batch block; fold 1/sqrt(d) into q (O(m*d), not O(m^2)).
    cos = cos_ref[...][None]                                          # (1, m, d)
    sin = sin_ref[...][None]                                          # sign-folded
    q_rot = ((q * cos + q_sw * sin) * scale).astype(jnp.bfloat16)
    k_rot = (k * cos + k_sw * sin).astype(jnp.bfloat16)

    # Per-sequence causal attention; scores cost is b_blk * m^2 (no cross-
    # sequence waste).  Mask generated in-kernel from iota (no HBM read).
    s = jnp.einsum("bqd,bkd->bqk", q_rot, k_rot,
                   preferred_element_type=jnp.float32)                # (b_blk, m, m)
    row = jax.lax.broadcasted_iota(jnp.int32, (m, m), 0)
    col = jax.lax.broadcasted_iota(jnp.int32, (m, m), 1)
    s = jnp.where((row >= col)[None], s, -1e30)

    s = s - jnp.max(s, axis=-1, keepdims=True)
    p = jnp.exp(s)
    p = p / jnp.sum(p, axis=-1, keepdims=True)                        # exact (tiny denom)

    out = jnp.einsum("bqk,bkd->bqd", p.astype(jnp.bfloat16), v.astype(jnp.bfloat16),
                     preferred_element_type=jnp.float32)              # (b_blk, m, d)
    o_ref[...] = out.astype(o_ref.dtype)


def rope_masked_attention_head(x, w_q, w_k, w_v, cos_tab, sin_tab, *,
                               max_rows_per_step=256):
    """x: (b, m, d) float32; w_*: (d, d) nn.Linear weights (out, in);
    cos_tab/sin_tab: (context_window, d) from get_rope_tables."""
    b, m, d = x.shape
    assert d % 2 == 0
    assert cos_tab.shape[0] >= m and cos_tab.shape[1] == d

    # Fused, pre-transposed weights in bf16; the RoPE even/odd swap is folded
    # in as two extra copies of Wq^T / Wk^T with columns 2i <-> 2i+1 swapped.
    perm = np.arange(d).reshape(d // 2, 2)[:, ::-1].reshape(d)
    wq_t, wk_t, wv_t = w_q.T, w_k.T, w_v.T
    w_fused = jnp.concatenate([wq_t, wk_t, wv_t, wq_t[:, perm], wk_t[:, perm]],
                              axis=1).astype(jnp.bfloat16)            # (d, 5d)

    # Batch-block selection:
    #  - b_blk must divide b (block last two dims are the full (m, d) extents,
    #    so no (8,128) issue regardless of m or d);
    #  - b_blk * m bounded so scores/softmax stay small in VMEM;
    #  - only pack >1 batch element when m % 8 == 0 (keeps the in-kernel
    #    (b_blk, m, d) <-> (b_blk*m, d) reshape sublane-aligned);
    #  - prefer >= 2 grid steps so v7x's two TensorCores both get work.
    max_bblk = max(1, max_rows_per_step // max(m, 1))
    if m % 8 != 0:
        max_bblk = 1
    divisors = [c for c in range(1, b + 1) if b % c == 0 and c <= max_bblk]
    preferred = [c for c in divisors if b // c >= 2]
    b_blk = max(preferred) if preferred else (max(divisors) if divisors else 1)
    grid = (b // b_blk,)

    out = pl.pallas_call(
        rope_attn_kernel,
        out_shape=jax.ShapeDtypeStruct((b, m, d), x.dtype),
        grid=grid,
        in_specs=[
            pl.BlockSpec((b_blk, m, d), lambda i: (i, 0, 0)),   # x (streamed)
            pl.BlockSpec((d, 5 * d), lambda i: (0, 0)),         # fused weights (resident, bf16)
            pl.BlockSpec((m, d), lambda i: (0, 0)),             # cos table (resident)
            pl.BlockSpec((m, d), lambda i: (0, 0)),             # sin table (resident)
        ],
        out_specs=pl.BlockSpec((b_blk, m, d), lambda i: (i, 0, 0)),
        compiler_params=pltpu.CompilerParams(dimension_semantics=("parallel",)),
    )(x, w_fused, cos_tab[:m], sin_tab[:m])
    return out


def _reference(x, w_q, w_k, w_v, R):
    b, m, d = x.shape
    q = x @ w_q.T
    k = x @ w_k.T
    v = x @ w_v.T
    Rm = R[:m]
    q_rot = jnp.einsum("bmd,mde->bme", q, Rm)
    k_rot = jnp.einsum("bmd,mde->bme", k, Rm)
    scores = jnp.einsum("bqd,bkd->bqk", q_rot, k_rot) / math.sqrt(d)
    mask = jnp.tril(jnp.ones((m, m), dtype=bool))
    scores = jnp.where(mask[None], scores, -jnp.inf)
    p = jax.nn.softmax(scores, axis=-1)
    return jnp.einsum("bqk,bkd->bqd", p, v)


if __name__ == "__main__":
    config = {"d_model": 32, "context_window": 16}
    b, m, d = 2, 8, config["d_model"]

    key = jax.random.PRNGKey(0)
    kx, kq, kk, kv = jax.random.split(key, 4)
    bound = 1.0 / math.sqrt(d)  # torch nn.Linear default init range
    w_q = jax.random.uniform(kq, (d, d), jnp.float32, -bound, bound)
    w_k = jax.random.uniform(kk, (d, d), jnp.float32, -bound, bound)
    w_v = jax.random.uniform(kv, (d, d), jnp.float32, -bound, bound)
    x = jax.random.normal(kx, (b, m, d), dtype=jnp.float32)

    cos_tab, sin_tab = get_rope_tables(config["context_window"], d)

    out = rope_masked_attention_head(x, w_q, w_k, w_v, cos_tab, sin_tab)
    out = jax.block_until_ready(out)

    R = get_rotary_matrix(config["context_window"], d)
    ref = _reference(x, w_q, w_k, w_v, R)
    assert out.shape == (b, m, d)
    # Residual error comes only from bf16 MXU operands (f32 accumulation);
    # structural bugs (mask / RoPE / projection) would show errors >> 0.1.
    assert jnp.max(jnp.abs(out - ref)) < 2e-2, "kernel mismatch vs JAX reference"

    print("KERNEL_OK")
</pallas_src>

<mosaic_0001>
module attributes {stable_mosaic.version = 11 : i64} {
  func.func @rope_attn_kernel(%arg0: i32, %arg1: memref<1x8x32xf32, #tpu.memory_space<vmem>>, %arg2: memref<32x160xbf16, #tpu.memory_space<vmem>>, %arg3: memref<8x32xf32, #tpu.memory_space<vmem>>, %arg4: memref<8x32xf32, #tpu.memory_space<vmem>>, %arg5: memref<1x8x32xf32, #tpu.memory_space<vmem>>) attributes {dimension_semantics = [#tpu.dimension_semantics<parallel>], iteration_bounds = array<i64: 2>, scalar_prefetch = 0 : i64, scratch_operands = 0 : i64, tpu.core_type = #tpu.core_type<tc>, window_params = [{transform_indices = @transform_0, window_bounds = array<i64: 1, 8, 32>}, {pipeline_mode = #tpu.pipeline_mode<synchronous>, transform_indices = @transform_1, window_bounds = array<i64: 32, 160>}, {pipeline_mode = #tpu.pipeline_mode<synchronous>, transform_indices = @transform_2, window_bounds = array<i64: 8, 32>}, {pipeline_mode = #tpu.pipeline_mode<synchronous>, transform_indices = @transform_3, window_bounds = array<i64: 8, 32>}, {transform_indices = @transform_4, window_bounds = array<i64: 1, 8, 32>}]} {
    %c0 = arith.constant 0 : index
    %c0_0 = arith.constant 0 : index
    %c0_1 = arith.constant 0 : index
    %0 = vector.load %arg1[%c0, %c0_0, %c0_1] : memref<1x8x32xf32, #tpu.memory_space<vmem>>, vector<1x8x32xf32>
    %1 = vector.shape_cast %0 : vector<1x8x32xf32> to vector<8x32xf32>
    %2 = arith.truncf %1 : vector<8x32xf32> to vector<8x32xbf16>
    %c0_2 = arith.constant 0 : index
    %c0_3 = arith.constant 0 : index
    %3 = vector.load %arg2[%c0_2, %c0_3] : memref<32x160xbf16, #tpu.memory_space<vmem>>, vector<32x160xbf16>
    %cst = arith.constant dense<0.000000e+00> : vector<8x160xf32>
    %4 = tpu.matmul %2, %3, %cst {dimension_numbers = #tpu.dot_dimension_numbers<[1], [0], [0], [1], [0, 0, 1, 1], [], []>} : vector<8x32xbf16>, vector<32x160xbf16>, vector<8x160xf32> -> vector<8x160xf32>
    %5 = vector.shape_cast %4 : vector<8x160xf32> to vector<1x8x160xf32>
    %6 = vector.extract_strided_slice %5 {offsets = [0, 0, 0], sizes = [1, 8, 32], strides = [1, 1, 1]} : vector<1x8x160xf32> to vector<1x8x32xf32>
    %7 = vector.extract_strided_slice %5 {offsets = [0, 0, 32], sizes = [1, 8, 32], strides = [1, 1, 1]} : vector<1x8x160xf32> to vector<1x8x32xf32>
    %8 = vector.extract_strided_slice %5 {offsets = [0, 0, 64], sizes = [1, 8, 32], strides = [1, 1, 1]} : vector<1x8x160xf32> to vector<1x8x32xf32>
    %9 = vector.extract_strided_slice %5 {offsets = [0, 0, 96], sizes = [1, 8, 32], strides = [1, 1, 1]} : vector<1x8x160xf32> to vector<1x8x32xf32>
    %10 = vector.extract_strided_slice %5 {offsets = [0, 0, 128], sizes = [1, 8, 32], strides = [1, 1, 1]} : vector<1x8x160xf32> to vector<1x8x32xf32>
    %c0_4 = arith.constant 0 : index
    %c0_5 = arith.constant 0 : index
    %11 = vector.load %arg3[%c0_4, %c0_5] : memref<8x32xf32, #tpu.memory_space<vmem>>, vector<8x32xf32>
    %12 = vector.shape_cast %11 : vector<8x32xf32> to vector<1x8x32xf32>
    %c0_6 = arith.constant 0 : index
    %c0_7 = arith.constant 0 : index
    %13 = vector.load %arg4[%c0_6, %c0_7] : memref<8x32xf32, #tpu.memory_space<vmem>>, vector<8x32xf32>
    %14 = vector.shape_cast %13 : vector<8x32xf32> to vector<1x8x32xf32>
    %15 = arith.mulf %6, %12 : vector<1x8x32xf32>
    %16 = arith.mulf %9, %14 : vector<1x8x32xf32>
    %17 = arith.addf %15, %16 : vector<1x8x32xf32>
    %cst_8 = arith.constant 0.176776692 : f32
    %18 = vector.broadcast %cst_8 : f32 to vector<1x8x32xf32>
    %19 = arith.mulf %17, %18 : vector<1x8x32xf32>
    %20 = arith.truncf %19 : vector<1x8x32xf32> to vector<1x8x32xbf16>
    %21 = arith.mulf %7, %12 : vector<1x8x32xf32>
    %22 = arith.mulf %10, %14 : vector<1x8x32xf32>
    %23 = arith.addf %21, %22 : vector<1x8x32xf32>
    %24 = arith.truncf %23 : vector<1x8x32xf32> to vector<1x8x32xbf16>
    "tpu.trace_start"() <{level = 10 : i32, message = "bqd,bkd->bqk"}> : () -> ()
    %cst_9 = arith.constant dense<0.000000e+00> : vector<1x8x8xf32>
    %25 = tpu.matmul %20, %24, %cst_9 {dimension_numbers = #tpu.dot_dimension_numbers<[2], [2], [1], [1], [0, 0, 0, 1, 1, 1], [0], [0]>} : vector<1x8x32xbf16>, vector<1x8x32xbf16>, vector<1x8x8xf32> -> vector<1x8x8xf32>
    "tpu.trace_stop"() : () -> ()
    %26 = tpu.iota {dimensions = array<i32: 0>} : vector<8x8xi32>
    %27 = tpu.iota {dimensions = array<i32: 1>} : vector<8x8xi32>
    %28 = arith.cmpi sge, %26, %27 : vector<8x8xi32>
    %29 = vector.shape_cast %28 : vector<8x8xi1> to vector<1x8x8xi1>
    %cst_10 = arith.constant -1.000000e+30 : f32
    %30 = vector.broadcast %cst_10 : f32 to vector<1x8x8xf32>
    %31 = arith.select %29, %25, %30 : vector<1x8x8xi1>, vector<1x8x8xf32>
    %cst_11 = arith.constant dense<0xFF800000> : vector<1x8xf32>
    %32 = vector.multi_reduction <maximumf>, %31, %cst_11 [2] : vector<1x8x8xf32> to vector<1x8xf32>
    %33 = vector.shape_cast %32 : vector<1x8xf32> to vector<1x8x1xf32>
    %34 = vector.broadcast %33 : vector<1x8x1xf32> to vector<1x8x8xf32>
    %35 = arith.subf %31, %34 : vector<1x8x8xf32>
    %36 = math.exp %35 : vector<1x8x8xf32>
    %cst_12 = arith.constant dense<0.000000e+00> : vector<1x8xf32>
    %37 = vector.multi_reduction <add>, %36, %cst_12 [2] : vector<1x8x8xf32> to vector<1x8xf32>
    %38 = vector.shape_cast %37 : vector<1x8xf32> to vector<1x8x1xf32>
    %39 = vector.broadcast %38 : vector<1x8x1xf32> to vector<1x8x8xf32>
    %40 = arith.divf %36, %39 : vector<1x8x8xf32>
    %41 = arith.truncf %40 : vector<1x8x8xf32> to vector<1x8x8xbf16>
    %42 = arith.truncf %8 : vector<1x8x32xf32> to vector<1x8x32xbf16>
    "tpu.trace_start"() <{level = 10 : i32, message = "bqk,bkd->bqd"}> : () -> ()
    %cst_13 = arith.constant dense<0.000000e+00> : vector<1x8x32xf32>
    %43 = tpu.matmul %41, %42, %cst_13 {dimension_numbers = #tpu.dot_dimension_numbers<[2], [1], [1], [2], [0, 0, 0, 1, 1, 2], [0], [0]>} : vector<1x8x8xbf16>, vector<1x8x32xbf16>, vector<1x8x32xf32> -> vector<1x8x32xf32>
    "tpu.trace_stop"() : () -> ()
    %c0_14 = arith.constant 0 : index
    %c0_15 = arith.constant 0 : index
    %c0_16 = arith.constant 0 : index
    %44 = vector.load %arg5[%c0_14, %c0_15, %c0_16] : memref<1x8x32xf32, #tpu.memory_space<vmem>>, vector<1x8x32xf32>
    tpu.vector_store %arg5[%c0_14, %c0_15, %c0_16], %43 {strides = array<i32>} : memref<1x8x32xf32, #tpu.memory_space<vmem>>, vector<1x8x32xf32>,
    return
  }
  func.func @transform_0(%arg0: i32) -> (i32, i32, i32) {
    %c0_i32 = arith.constant 0 : i32
    %c0_i32_0 = arith.constant 0 : i32
    %c0_i32_1 = arith.constant 0 : i32
    return %arg0, %c0_i32, %c0_i32_0 : i32, i32, i32
  }
  func.func @transform_1(%arg0: i32) -> (i32, i32) {
    %c0_i32 = arith.constant 0 : i32
    %c0_i32_0 = arith.constant 0 : i32
    %c0_i32_1 = arith.constant 0 : i32
    return %c0_i32, %c0_i32_0 : i32, i32
  }
  func.func @transform_2(%arg0: i32) -> (i32, i32) {
    %c0_i32 = arith.constant 0 : i32
    %c0_i32_0 = arith.constant 0 : i32
    %c0_i32_1 = arith.constant 0 : i32
    return %c0_i32, %c0_i32_0 : i32, i32
  }
  func.func @transform_3(%arg0: i32) -> (i32, i32) {
    %c0_i32 = arith.constant 0 : i32
    %c0_i32_0 = arith.constant 0 : i32
    %c0_i32_1 = arith.constant 0 : i32
    return %c0_i32, %c0_i32_0 : i32, i32
  }
  func.func @transform_4(%arg0: i32) -> (i32, i32, i32) {
    %c0_i32 = arith.constant 0 : i32
    %c0_i32_0 = arith.constant 0 : i32
    %c0_i32_1 = arith.constant 0 : i32
    return %arg0, %c0_i32, %c0_i32_0 : i32, i32, i32
  }
}

</mosaic_0001>

<llo_original>
// kernel: tpu_custom_call.1
$region0: #{tpu_custom_call.1}
  #allocation0 [shape = 'u32[]', space=smem, size = 0x4, offset = 0x4, fixed_abs, tag = 'smem constant byte address 0x4 - core index']
  #allocation1 [shape = 'u32[144,128]{1,0:T(1,128)}', space=vmem, size = 0x12000, scoped, tag = 'internal scratch']
  %s0 = inlined_call_operand.hbm [shape: f32[2,8,32], index: 0, kind: input, shape index: {}]
  %s1 = inlined_call_operand.hbm [shape: bf16[32,160], index: 1, kind: input, shape index: {}]
  %s2 = inlined_call_operand.hbm [shape: f32[8,32], index: 2, kind: input, shape index: {}]
  %s3 = inlined_call_operand.vmem [shape: f32[8,32], index: 3, kind: input, shape index: {}]
  %s4 = inlined_call_operand.hbm [shape: f32[2,8,32], index: 4, kind: output, shape index: {}]
  %s5 = sld [smem:[#allocation0]]
  $region61: #{tpu_custom_call.1} parent=0
    _
  %s7 = ssub.s32 1, %s5
  %s8 = scalar_select 0, %s7, %s5
  $region1: #{tpu_custom_call.1} parent=0
    #allocation2 [shape = 'u8[8192]{0}', space=vmem, size = 0x2000, scoped, tag = 'input window, operand 0']
    #allocation3 [shape = 's32[2]{0}', space=sflag, size = 0x8, scoped, tag = 'scoped memory for tpu_custom_call.1']
    #allocation4 [shape = 's32[2]{0}', space=sflag, size = 0x8, scoped, tag = 'scoped memory for tpu_custom_call.1']
    #allocation5 [shape = 'u8[16384]{0}', space=vmem, size = 0x4000, scoped, tag = 'input window, operand 1, single buffered']
    #allocation6 [shape = 's32[1]{0}', space=sflag, size = 0x4, scoped, tag = 'scoped memory for tpu_custom_call.1']
    #allocation7 [shape = 'u8[4096]{0}', space=vmem, size = 0x1000, scoped, tag = 'input window, operand 2, single buffered']
    #allocation8 [shape = 'u8[8192]{0}', space=vmem, size = 0x2000, scoped, tag = 'output window, operand 0']
    %9 = vsyncpa [#allocation3], 0
    %s10 = scalar_lea.sflag [#allocation3], 1
    %11 = vsyncpa %s10, 0
    %12 = vsyncpa [#allocation6], 0
    %13 = vsyncpa [#allocation4], 0
    %s14 = scalar_lea.sflag [#allocation4], 1
    %15 = vsyncpa %s14, 0
    loop: start=0, step=1, limit=4
    $region2: #{tpu_custom_call.1} parent=1 // loop_pre_header
      _
    $region3: #{tpu_custom_call.1} parent=1 // loop_header
      %s17 = sphi 0, %s21
      %p18 = scmp.ge.s32.totalorder %s17, 4
      %s27 = sphi 0, %s29
      %s30 = sphi 0, %s27
      %s31 = sphi 0, %s30
      %s47 = sphi 0, %s31
      %s51 = sphi 0, %s51
      %s53 = sphi 0, %s51
      %s54 = sphi 0, %s53
      %s68 = sphi 0, %s54
      %s72 = sphi 0, %s72
      %s74 = sphi 0, %s72
      %s75 = sphi 0, %s74
      %s89 = sphi 0, %s75
      %s93 = sphi 0, %s93
      %s95 = sphi 0, %s93
      %s96 = sphi 0, %s95
      %s110 = sphi 0, %s96
      %s116 = sphi 0, %s118
      %s119 = sphi 0, %s116
      %s120 = sphi 0, %s119
      %s136 = sphi 0, %s120
    $region4: #{tpu_custom_call.1} parent=1 // loop_header_branch
      %20 = sbr.rel (%p18) target = $region8
    $region5: #{tpu_custom_call.1} parent=1 // loop_body
      %s22 = ssub.s32 %s17, 1
      %s23 = ssub.s32 %s17, 2
      %s24 = sadd.s32 %s17, 1
      %s25 = ssub.s32 %s17, %s24
      %p26 = scmp.eq.s32.totalorder %s25, 0
      %s28 = sadd.s32 %s27, 1
      %s29 = scalar_select %p26, %s27, %s28
      %p32 = pneg %p26
      %p33 = scmp.eq.s32.totalorder %s17, 1
      %p34 = por %p32, %p33
      %p35 = scmp.ne.s32.totalorder %s27, %s30
      %p36 = scmp.eq.s32.totalorder %s17, 0
      %p37 = por %p35, %p36
      %p38 = scmp.ne.s32.totalorder %s27, %s30
      %p39 = scmp.eq.s32.totalorder %s22, 1
      %p40 = por %p38, %p39
      %p41 = scmp.ne.s32.totalorder %s30, %s31
      %p42 = scmp.eq.s32.totalorder %s22, 0
      %p43 = por %p41, %p42
      %p44 = scmp.ne.s32.totalorder %s30, %s31
      %p45 = scmp.eq.s32.totalorder %s23, 1
      %p46 = por %p44, %p45
      %p48 = scmp.ne.s32.totalorder %s31, %s47
      %p49 = scmp.eq.s32.totalorder %s23, 0
      %p50 = por %p48, %p49
      %s52 = sadd.s32 %s51, 1
      %p55 = scmp.eq.s32.totalorder %s17, 1
      %p56 = scmp.ne.s32.totalorder %s51, %s53
      %p57 = scmp.eq.s32.totalorder %s17, 0
      %p58 = por %p56, %p57
      %p59 = scmp.ne.s32.totalorder %s51, %s53
      %p60 = scmp.eq.s32.totalorder %s22, 1
      %p61 = por %p59, %p60
      %p62 = scmp.ne.s32.totalorder %s53, %s54
      %p63 = scmp.eq.s32.totalorder %s22, 0
      %p64 = por %p62, %p63
      %p65 = scmp.ne.s32.totalorder %s53, %s54
      %p66 = scmp.eq.s32.totalorder %s23, 1
      %p67 = por %p65, %p66
      %p69 = scmp.ne.s32.totalorder %s54, %s68
      %p70 = scmp.eq.s32.totalorder %s23, 0
      %p71 = por %p69, %p70
      %s73 = sadd.s32 %s72, 1
      %p76 = scmp.eq.s32.totalorder %s17, 1
      %p77 = scmp.ne.s32.totalorder %s72, %s74
      %p78 = scmp.eq.s32.totalorder %s17, 0
      %p79 = por %p77, %p78
      %p80 = scmp.ne.s32.totalorder %s72, %s74
      %p81 = scmp.eq.s32.totalorder %s22, 1
      %p82 = por %p80, %p81
      %p83 = scmp.ne.s32.totalorder %s74, %s75
      %p84 = scmp.eq.s32.totalorder %s22, 0
      %p85 = por %p83, %p84
      %p86 = scmp.ne.s32.totalorder %s74, %s75
      %p87 = scmp.eq.s32.totalorder %s23, 1
      %p88 = por %p86, %p87
      %p90 = scmp.ne.s32.totalorder %s75, %s89
      %p91 = scmp.eq.s32.totalorder %s23, 0
      %p92 = por %p90, %p91
      %s94 = sadd.s32 %s93, 1
      %p97 = scmp.eq.s32.totalorder %s17, 1
      %p98 = scmp.ne.s32.totalorder %s93, %s95
      %p99 = scmp.eq.s32.totalorder %s17, 0
      %p100 = por %p98, %p99
      %p101 = scmp.ne.s32.totalorder %s93, %s95
      %p102 = scmp.eq.s32.totalorder %s22, 1
      %p103 = por %p101, %p102
      %p104 = scmp.ne.s32.totalorder %s95, %s96
      %p105 = scmp.eq.s32.totalorder %s22, 0
      %p106 = por %p104, %p105
      %p107 = scmp.ne.s32.totalorder %s95, %s96
      %p108 = scmp.eq.s32.totalorder %s23, 1
      %p109 = por %p107, %p108
      %p111 = scmp.ne.s32.totalorder %s96, %s110
      %p112 = scmp.eq.s32.totalorder %s23, 0
      %p113 = por %p111, %p112
      %s114 = ssub.s32 %s17, %s24
      %p115 = scmp.eq.s32.totalorder %s114, 0
      %s117 = sadd.s32 %s116, 1
      %s118 = scalar_select %p115, %s116, %s117
      %p121 = pneg %p115
      %p122 = scmp.eq.s32.totalorder %s17, 1
      %p123 = por %p121, %p122
      %p124 = scmp.ne.s32.totalorder %s116, %s119
      %p125 = scmp.eq.s32.totalorder %s17, 0
      %p126 = por %p124, %p125
      %p127 = scmp.ne.s32.totalorder %s116, %s119
      %p128 = scmp.eq.s32.totalorder %s22, 1
      %p129 = por %p127, %p128
      %p130 = scmp.ne.s32.totalorder %s119, %s120
      %p131 = scmp.eq.s32.totalorder %s22, 0
      %p132 = por %p130, %p131
      %p133 = scmp.ne.s32.totalorder %s119, %s120
      %p134 = scmp.eq.s32.totalorder %s23, 1
      %p135 = por %p133, %p134
      %p137 = scmp.ne.s32.totalorder %s120, %s136
      %p138 = scmp.eq.s32.totalorder %s23, 0
      %p139 = por %p137, %p138
      %p140 = scmp.le.s32.totalorder 1, %s17
      %p141 = scmp.lt.s32.totalorder %s17, 3
      %p142 = pnand %p140, %p141
      %p143 = pneg %p142
      // Predicated region
      $region9: #{tpu_custom_call.1} parent=5 // pred_check
        _
      $region10: #{tpu_custom_call.1} parent=5 // pred_check_branch
        %145 = sbr.rel (%p142) target = $region12
      $region11: #{tpu_custom_call.1} parent=5 // pred_region
        %s146 = ssub.s32 %s17, 1
        // Predicated region
        $region13: #{tpu_custom_call.1} parent=11 // pred_check
          %p147 = pneg %p64
        $region14: #{tpu_custom_call.1} parent=11 // pred_check_branch
          %149 = sbr.rel (%p147) target = $region16
        $region15: #{tpu_custom_call.1} parent=11 // pred_region
          %s151 = ssub.s32 512, 512
          %152 = vsyncadd [#allocation6], %s151
          %s153 = sshll.u32 [#allocation5], 4
          %s154 = int_to_ptr.vmem [resolvable:$true] %s153
          %159 = dma.hbm_to_vmem [thread:$0]  %s1, 512, %s154, [#allocation6], 128, 128, 8
        $region16: #{tpu_custom_call.1} parent=11 // pred_fallthru
          _
        // Predicated region
        $region17: #{tpu_custom_call.1} parent=11 // pred_check
          %p160 = pneg %p85
        $region18: #{tpu_custom_call.1} parent=11 // pred_check_branch
          %162 = sbr.rel (%p160) target = $region20
        $region19: #{tpu_custom_call.1} parent=11 // pred_region
          %s164 = ssub.s32 128, 128
          %165 = vsyncadd [#allocation6], %s164
          %s167 = sshll.u32 [#allocation7], 4
          %s168 = int_to_ptr.vmem [resolvable:$true] %s167
          %170 = dma.hbm_to_vmem [thread:$0]  %s2, 128, %s168, [#allocation6]
        $region20: #{tpu_custom_call.1} parent=11 // pred_fallthru
          _
        // Predicated region
        $region21: #{tpu_custom_call.1} parent=11 // pred_check
          %p171 = pneg %p106
        $region22: #{tpu_custom_call.1} parent=11 // pred_check_branch
          %173 = sbr.rel (%p171) target = $region24
        $region23: #{tpu_custom_call.1} parent=11 // pred_region
          _
        $region24: #{tpu_custom_call.1} parent=11 // pred_fallthru
          _
      $region12: #{tpu_custom_call.1} parent=5 // pred_fallthru
        _
      %p174 = scmp.lt.s32.totalorder %s17, 2
      // Predicated region
      $region25: #{tpu_custom_call.1} parent=5 // pred_check
        %p175 = pneg %p174
      $region26: #{tpu_custom_call.1} parent=5 // pred_check_branch
        %177 = sbr.rel (%p175) target = $region28
      $region27: #{tpu_custom_call.1} parent=5 // pred_region
        // Predicated region
        $region29: #{tpu_custom_call.1} parent=27 // pred_check
          %p178 = pneg %p37
        $region30: #{tpu_custom_call.1} parent=27 // pred_check_branch
          %180 = sbr.rel (%p178) target = $region32
        $region31: #{tpu_custom_call.1} parent=27 // pred_region
          %s181 = sand.u32 %s27, 1
          %s182 = scalar_lea.sflag [#allocation3], %s181
          %s183 = sand.u32 %s27, 1
          %s184 = smul.addr %s183, 8
          %s185 = scalar_lea.vmem [#allocation2], %s184
          %s187 = ssub.s32 128, 128
          %188 = vsyncadd %s182, %s187
          %s189 = smul.addr %s17, 128
          %s190 = scalar_lea.hbm %s0, %s189
          %s192 = sshll.u32 %s185, 4
          %s193 = int_to_ptr.vmem [resolvable:$true] %s192
          %195 = dma.hbm_to_vmem [thread:$0]  %s190, 128, %s193, %s182
        $region32: #{tpu_custom_call.1} parent=27 // pred_fallthru
          _
      $region28: #{tpu_custom_call.1} parent=5 // pred_fallthru
        _
      %p196 = scmp.le.s32.totalorder 1, %s17
      %p197 = scmp.lt.s32.totalorder %s17, 3
      %p198 = pnand %p196, %p197
      %p199 = pneg %p198
      // Predicated region
      $region33: #{tpu_custom_call.1} parent=5 // pred_check
        _
      $region34: #{tpu_custom_call.1} parent=5 // pred_check_branch
        %201 = sbr.rel (%p198) target = $region36
      $region35: #{tpu_custom_call.1} parent=5 // pred_region
        %s202 = ssub.s32 %s17, 1
        %s203 = sand.u32 %s30, 1
        %s204 = scalar_lea.sflag [#allocation3], %s203
        %s205 = sand.u32 %s30, 1
        %s206 = smul.addr %s205, 8
        %s207 = scalar_lea.vmem [#allocation2], %s206
        // Predicated region
        $region37: #{tpu_custom_call.1} parent=35 // pred_check
          %p208 = pneg %p43
        $region38: #{tpu_custom_call.1} parent=35 // pred_check_branch
          %210 = sbr.rel (%p208) target = $region40
        $region39: #{tpu_custom_call.1} parent=35 // pred_region
          %211 = dma.done %s204, 128
        $region40: #{tpu_custom_call.1} parent=35 // pred_fallthru
          _
        // Predicated region
        $region41: #{tpu_custom_call.1} parent=35 // pred_check
          %p212 = pneg %p64
        $region42: #{tpu_custom_call.1} parent=35 // pred_check_branch
          %214 = sbr.rel (%p212) target = $region44
        $region43: #{tpu_custom_call.1} parent=35 // pred_region
          %215 = dma.done [#allocation6], 512
        $region44: #{tpu_custom_call.1} parent=35 // pred_fallthru
          _
        // Predicated region
        $region45: #{tpu_custom_call.1} parent=35 // pred_check
          %p216 = pneg %p85
        $region46: #{tpu_custom_call.1} parent=35 // pred_check_branch
          %218 = sbr.rel (%p216) target = $region48
        $region47: #{tpu_custom_call.1} parent=35 // pred_region
          %219 = dma.done [#allocation6], 128
        $region48: #{tpu_custom_call.1} parent=35 // pred_fallthru
          _
        %s220 = sand.u32 %s30, 1
        %s221 = scalar_lea.sflag [#allocation3], %s220
        %s222 = sand.u32 %s30, 1
        %s223 = smul.addr %s222, 8
        %s224 = scalar_lea.vmem [#allocation2], %s223
        %p225 = pneg %p43
        %p226 = pneg %p40
        %p227 = pneg %p64
        %p228 = pneg %p61
        %p229 = pneg %p85
        %p230 = pneg %p82
        %p231 = pneg %p106
        %p232 = pneg %p103
        %p233 = pneg %p132
        %p234 = pneg %p129
        %s235 = sand.u32 %s119, 1
        %s236 = scalar_lea.sflag [#allocation4], %s235
        %s237 = sand.u32 %s119, 1
        %s238 = smul.addr %s237, 8
        %s239 = scalar_lea.vmem [#allocation8], %s238
        %v241 = vld [vmem:[%s207] sm:$0xff]
        %v242 = vpack.c.bf16 %v241, %v241
        %v243 = vld [vmem:[#allocation5] sm:$0xff]
        %v244 = vld [vmem:[#allocation5 + $0x8] sm:$0xff]
        %v245 = vld [vmem:[#allocation5 + $0x10] sm:$0xff]
        %v246 = vld [vmem:[#allocation5 + $0x18] sm:$0xff]
        %v251 = vunpack.c.l.b16 %v243
        %v252 = vunpack.c.h.b16 %v243
        %v253 = vunpack.c.l.b16 %v244
        %v254 = vunpack.c.h.b16 %v244
        %v255 = vunpack.c.l.b16 %v245
        %v256 = vunpack.c.h.b16 %v245
        %v257 = vunpack.c.l.b16 %v246
        %v258 = vunpack.c.h.b16 %v246
        %v259 = vpack.c.b16 %v253, %v251
        %v260 = vpack.c.b16 %v254, %v252
        %v261 = vpack.c.b16 %v257, %v255
        %v262 = vpack.c.b16 %v258, %v256
        %vm267 = vcmask 261120
        %v269 = vsel %vm267, %v242, 0
        %271 = vmatprep.subr.bf16.mxu0 %v260
        %272 = vmatpush1.bf16.msra.mxu0 %v259
        %273 = vmatprep.subr.bf16.mxu0 %v262
        %274 = vmatpush1.bf16.msra.mxu0 %v261
        %275 = vmatprep.subr.bf16.mxu0 0
        %276 = vmatpush1.bf16.msra.mxu0 0
        %277 = vmatprep.subr.bf16.mxu0 0
        %278 = vmatpush1.bf16.msra.mxu0 0
        %279 = vmatprep.subr.bf16.mxu0 0
        %280 = vmatpush1.bf16.msra.mxu0 0
        %281 = vmatprep.subr.bf16.mxu0 0
        %282 = vmatpush1.bf16.msra.mxu0 0
        %283 = vmatprep.subr.bf16.mxu0 0
        %284 = vmatpush1.bf16.msra.mxu0 0
        %285 = vmatprep.subr.bf16.mxu0 0
        %286 = vmatpush1.bf16.msra.mxu0 0
        %287 = vmatprep.subr.bf16.mxu0 0
        %288 = vmatpush1.bf16.msra.mxu0 0
        %289 = vmatprep.subr.bf16.mxu0 0
        %290 = vmatpush1.bf16.msra.mxu0 0
        %291 = vmatprep.subr.bf16.mxu0 0
        %292 = vmatpush1.bf16.msra.mxu0 0
        %293 = vmatprep.subr.bf16.mxu0 0
        %294 = vmatpush1.bf16.msra.mxu0 0
        %295 = vmatprep.subr.bf16.mxu0 0
        %296 = vmatpush1.bf16.msra.mxu0 0
        %297 = vmatprep.subr.bf16.mxu0 0
        %298 = vmatpush1.bf16.msra.mxu0 0
        %299 = vmatprep.subr.bf16.mxu0 0
        %300 = vmatpush1.bf16.msra.mxu0 0
        %301 = vmatprep.subr.bf16.mxu0 0
        %302 = vmatpush1.bf16.msra.mxu0 0
        %303 = vmatprep.mubr.bf16.mxu0 0
        %304 = vmatmul.mubr.bf16.gmra.mrb[0].mxu0 %v269
        %v305 = vpop.f32.mrb[0].mxu0
        %v306 = vadd.f32 0.0, %v305
        %v307 = vpop.f32.mrb[0].mxu0
        %v308 = vadd.f32 0.0, %v307
        %v309 = vpop.f32.mrb[0].mxu0
        %v310 = vpop.f32.mrb[0].mxu0
        %311 = vdwg.mxu0
        %v312 = vld [vmem:[#allocation7] sm:$0xff]
        %v313 = vld [vmem:[%s3] sm:$0xff]
        %v314 = vmul.f32 %v306, %v312
        %316 = vrot.lane.b32.xlu0 %v313, 96
        %v317 = vpop.permute.xlu0 %316
        %v319 = vmul.f32 %v306, %v317
        %321 = vrot.lane.b32.xlu0 %v319, 32
        %v322 = vpop.permute.xlu0 %321
        %v324 = vadd.f32 %v314, %v322
        %v325 = vmul.f32 %v324, 0.17677669
        %v326 = vpack.c.bf16 %v325, %v325
        %328 = vrot.lane.b32.xlu0 %v312, 32
        %v329 = vpop.permute.xlu0 %328
        %v331 = vmul.f32 %v306, %v329
        %v332 = vmul.f32 %v308, %v313
        %334 = vrot.lane.b32.xlu0 %v332, 32
        %v335 = vpop.permute.xlu0 %334
        %v337 = vadd.f32 %v331, %v335
        %v338 = vpack.c.bf16 %v337, %v337
        %340 = vrot.lane.b32.xlu0 %v338, 96
        %v341 = vpop.permute.xlu0 %340
        %v343 = vsel %vm267, %v326, 0
        %v346 = vsel %vm267, %v341, 0
        %348 = vmatprep.subr.bf16.mxu0 0
        %349 = vmatpush1.bf16.xpose.msra.mxu0 %v346
        %350 = vmatprep.subr.bf16.mxu0 0
        %351 = vmatpush1.bf16.xpose.msra.mxu0 0
        %352 = vmatprep.subr.bf16.mxu0 0
        %353 = vmatpush1.bf16.xpose.msra.mxu0 0
        %354 = vmatprep.subr.bf16.mxu0 0
        %355 = vmatpush1.bf16.xpose.msra.mxu0 0
        %356 = vmatprep.subr.bf16.mxu0 0
        %357 = vmatpush1.bf16.xpose.msra.mxu0 0
        %358 = vmatprep.subr.bf16.mxu0 0
        %359 = vmatpush1.bf16.xpose.msra.mxu0 0
        %360 = vmatprep.subr.bf16.mxu0 0
        %361 = vmatpush1.bf16.xpose.msra.mxu0 0
        %362 = vmatprep.subr.bf16.mxu0 0
        %363 = vmatpush1.bf16.xpose.msra.mxu0 0
        %364 = vmatprep.subr.bf16.mxu0 0
        %365 = vmatpush1.bf16.xpose.msra.mxu0 0
        %366 = vmatprep.subr.bf16.mxu0 0
        %367 = vmatpush1.bf16.xpose.msra.mxu0 0
        %368 = vmatprep.subr.bf16.mxu0 0
        %369 = vmatpush1.bf16.xpose.msra.mxu0 0
        %370 = vmatprep.subr.bf16.mxu0 0
        %371 = vmatpush1.bf16.xpose.msra.mxu0 0
        %372 = vmatprep.subr.bf16.mxu0 0
        %373 = vmatpush1.bf16.xpose.msra.mxu0 0
        %374 = vmatprep.subr.bf16.mxu0 0
        %375 = vmatpush1.bf16.xpose.msra.mxu0 0
        %376 = vmatprep.subr.bf16.mxu0 0
        %377 = vmatpush1.bf16.xpose.msra.mxu0 0
        %378 = vmatprep.subr.bf16.mxu0 0
        %379 = vmatpush1.bf16.xpose.msra.mxu0 0
        %380 = vmatprep.mubr.bf16.mxu0 0
        %381 = vmatmul.mubr.bf16.gmra.mrb[0].mxu0 %v343
        %v382 = vpop.f32.mrb[0].mxu0
        %v383 = vadd.f32 0.0, %v382
        %v384 = vpop.f32.mrb[0].mxu0
        %v385 = vpop.f32.mrb[0].mxu0
        %v386 = vpop.f32.mrb[0].mxu0
        %387 = vdwg.mxu0
        %v388 = vlaneseq
        %v389 = vshrl.u32 %v388, 7
        %v390 = vlaneseq
        %v391 = vand.u32 %v390, 127
        %vm392 = vcmp.ge.s32.totalorder %v389, %v391
        %v393 = vsel %vm392, %v383, -1e+30
        %vm394 = vcmask 64512
        %v395 = vsel %vm394, %v393, -inf
        %396 = vmax.xlane.f32.xlu0 %v395
        %v397 = vpop.xlane.xlu0 %396
        %v398 = vsub.f32 %v393, %v397
        %v399 = vmul.f32 %v398, 1.442695
        %v400 = vpow.pop %v399
        %v401 = vsel %vm394, %v400, 0.0
        %402 = vadd.xlane.f32.xlu0 %v401
        %v403 = vpop.xlane.xlu0 %402
        %v404 = vrcp.pop %v403
        %v405 = vmul.f32 %v400, %v404
        %v406 = vpack.c.bf16 %v405, %v405
        %v407 = vpack.c.bf16 %v306, %v306
        %409 = vrot.lane.b32.xlu0 %v407, 64
        %v410 = vpop.permute.xlu0 %409
        %v412 = vsel %vm394, %v406, 0
        %vm414 = vcmask 1043456
        %v416 = vsel %vm414, %v410, 0
        %418 = vmatprep.subr.bf16.mxu0 0
        %419 = vmatpush1.bf16.msra.mxu0 %v416
        %420 = vmatprep.subr.bf16.mxu0 0
        %421 = vmatpush1.bf16.msra.mxu0 0
        %422 = vmatprep.subr.bf16.mxu0 0
        %423 = vmatpush1.bf16.msra.mxu0 0
        %424 = vmatprep.subr.bf16.mxu0 0
        %425 = vmatpush1.bf16.msra.mxu0 0
        %426 = vmatprep.subr.bf16.mxu0 0
        %427 = vmatpush1.bf16.msra.mxu0 0
        %428 = vmatprep.subr.bf16.mxu0 0
        %429 = vmatpush1.bf16.msra.mxu0 0
        %430 = vmatprep.subr.bf16.mxu0 0
        %431 = vmatpush1.bf16.msra.mxu0 0
        %432 = vmatprep.subr.bf16.mxu0 0
        %433 = vmatpush1.bf16.msra.mxu0 0
        %434 = vmatprep.subr.bf16.mxu0 0
        %435 = vmatpush1.bf16.msra.mxu0 0
        %436 = vmatprep.subr.bf16.mxu0 0
        %437 = vmatpush1.bf16.msra.mxu0 0
        %438 = vmatprep.subr.bf16.mxu0 0
        %439 = vmatpush1.bf16.msra.mxu0 0
        %440 = vmatprep.subr.bf16.mxu0 0
        %441 = vmatpush1.bf16.msra.mxu0 0
        %442 = vmatprep.subr.bf16.mxu0 0
        %443 = vmatpush1.bf16.msra.mxu0 0
        %444 = vmatprep.subr.bf16.mxu0 0
        %445 = vmatpush1.bf16.msra.mxu0 0
        %446 = vmatprep.subr.bf16.mxu0 0
        %447 = vmatpush1.bf16.msra.mxu0 0
        %448 = vmatprep.subr.bf16.mxu0 0
        %449 = vmatpush1.bf16.msra.mxu0 0
        %450 = vmatprep.mubr.bf16.mxu0 0
        %451 = vmatmul.mubr.bf16.gmra.mrb[0].mxu0 %v412
        %v452 = vpop.f32.mrb[0].mxu0
        %v453 = vadd.f32 0.0, %v452
        %v454 = vpop.f32.mrb[0].mxu0
        %v455 = vpop.f32.mrb[0].mxu0
        %v456 = vpop.f32.mrb[0].mxu0
        %457 = vdwg.mxu0
        %458 = vst.msk [vmem:[%s239] sm:$0xff] %vm267, %v453
        %s459 = sand.u32 %s119, 1
        %s460 = scalar_lea.sflag [#allocation4], %s459
        %s461 = sand.u32 %s119, 1
        %s462 = smul.addr %s461, 8
        %s463 = scalar_lea.vmem [#allocation8], %s462
        // Predicated region
        $region49: #{tpu_custom_call.1} parent=35 // pred_check
          %p464 = pneg %p129
        $region50: #{tpu_custom_call.1} parent=35 // pred_check_branch
          %466 = sbr.rel (%p464) target = $region52
        $region51: #{tpu_custom_call.1} parent=35 // pred_region
          %s468 = ssub.s32 128, 128
          %469 = vsyncadd %s460, %s468
          %s470 = smul.addr %s22, 128
          %s471 = scalar_lea.hbm %s4, %s470
          %s473 = sshll.u32 %s463, 4
          %s474 = int_to_ptr.vmem [resolvable:$true] %s473
          %476 = dma.vmem_to_hbm [thread:$0]  %s474, 128, %s471, %s460
        $region52: #{tpu_custom_call.1} parent=35 // pred_fallthru
          _
      $region36: #{tpu_custom_call.1} parent=5 // pred_fallthru
        _
      %p477 = scmp.le.s32.totalorder 2, %s17
      // Predicated region
      $region53: #{tpu_custom_call.1} parent=5 // pred_check
        %p478 = pneg %p477
      $region54: #{tpu_custom_call.1} parent=5 // pred_check_branch
        %480 = sbr.rel (%p478) target = $region56
      $region55: #{tpu_custom_call.1} parent=5 // pred_region
        %s481 = ssub.s32 %s17, 2
        // Predicated region
        $region57: #{tpu_custom_call.1} parent=55 // pred_check
          %p482 = pneg %p135
        $region58: #{tpu_custom_call.1} parent=55 // pred_check_branch
          %484 = sbr.rel (%p482) target = $region60
        $region59: #{tpu_custom_call.1} parent=55 // pred_region
          %s485 = sand.u32 %s120, 1
          %s486 = scalar_lea.sflag [#allocation4], %s485
          %s487 = sand.u32 %s120, 1
          %s488 = smul.addr %s487, 8
          %s489 = scalar_lea.vmem [#allocation8], %s488
          %490 = dma.done %s486, 128
        $region60: #{tpu_custom_call.1} parent=55 // pred_fallthru
          _
      $region56: #{tpu_custom_call.1} parent=5 // pred_fallthru
        _
    $region6: #{tpu_custom_call.1} parent=1 // loop_footer
      %s21 = sadd.s32 1, %s17
    $region7: #{tpu_custom_call.1} parent=1 // loop_footer_branch
      %16 = sbr.rel target = $region3
    $region8: #{tpu_custom_call.1} parent=1 // loop_exit
      _
    %491 = vsyncpa [#allocation3], 1
    %s492 = scalar_lea.sflag [#allocation3], 1
    %493 = vsyncpa %s492, 1
    %494 = vsyncpa [#allocation6], 1
    %495 = vsyncpa [#allocation4], 1
    %s496 = scalar_lea.sflag [#allocation4], 1
    %497 = vsyncpa %s496, 1

</llo_original>
